<compile_context>
chip_gen: v5e
topology: v5e:2x2
jax: 0.10.0
libtpu: 0.0.40
codegen_flags: <defaults>
</compile_context>

<pallas_src>
import jax
import jax.numpy as jnp
from jax.experimental import pallas as pl
from jax.experimental.pallas import tpu as pltpu


def _sigmoid(x):
    # Exact sigmoid; exp goes to the EUP slot, the divide is cheap at this tile size.
    return 1.0 / (1.0 + jnp.exp(-x))


def scse_kernel(x_ref, w1_ref, b1_ref, w2t_ref, b2_ref, wst_ref, bs_ref, o_ref):
    # x_ref block: (1, C, HW) -> work on (C, HW) with HW on the lane axis.
    x = x_ref[0]                                          # (C, HW) f32

    # ---- cSE branch ----------------------------------------------------------------
    # Global average pool over spatial = lane reduce per channel.
    mean = jnp.mean(x, axis=1, keepdims=True)             # (C, 1)
    # FC1 (C -> mid), mid is tiny (2): VPU broadcast-mul + sublane reduce, no MXU.
    h = jnp.sum(mean * w1_ref[...], axis=0, keepdims=True) + b1_ref[...]   # (1, mid)
    h = jnp.maximum(h, 0.0)                               # ReLU
    # FC2 (mid -> C): w2 passed pre-transposed as (C, mid); lane reduce -> (C, 1).
    cse = _sigmoid(jnp.sum(w2t_ref[...] * h, axis=1, keepdims=True) + b2_ref[...])  # (C, 1)

    # ---- sSE branch ----------------------------------------------------------------
    # 1x1 conv C->C over every pixel: (C, C) @ (C, HW) on the MXU, lane-dense output.
    sse = _sigmoid(jnp.dot(wst_ref[...], x,
                           preferred_element_type=jnp.float32) + bs_ref[...])       # (C, HW)

    # ---- combine: x*cSE + x*sSE == x * (cSE + sSE) ----------------------------------
    o_ref[0] = x * (cse + sse)


def scse_block(x_nchw, w1, b1, w2, b2, ws, bs):
    """x_nchw: (N, C, H, W) float32. Weights stored as (in, out) matrices."""
    N, C, H, W = x_nchw.shape
    HW = H * W
    mid = w1.shape[1]

    # NCHW -> (N, C, HW): a free view (no transpose, no extra HBM pass).
    x = x_nchw.reshape(N, C, HW).astype(jnp.float32)

    # Tiny one-time weight reshapes/transposes in the wrapper so the kernel layout
    # is channels-on-sublane / HW-on-lane everywhere.
    w1_2d = w1.astype(jnp.float32)                        # (C, mid)
    b1_2d = b1.reshape(1, mid).astype(jnp.float32)        # (1, mid)
    w2t = jnp.transpose(w2).astype(jnp.float32)           # (C, mid)
    b2_2d = b2.reshape(C, 1).astype(jnp.float32)          # (C, 1)
    wst = jnp.transpose(ws).astype(jnp.float32)           # (C, C)  out-channels on sublane
    bs_2d = bs.reshape(C, 1).astype(jnp.float32)          # (C, 1)

    out = pl.pallas_call(
        scse_kernel,
        out_shape=jax.ShapeDtypeStruct((N, C, HW), jnp.float32),
        grid_spec=pltpu.PrefetchScalarGridSpec(
            num_scalar_prefetch=0,
            grid=(N,),
            in_specs=[
                pl.BlockSpec((1, C, HW), lambda n: (n, 0, 0)),   # x
                pl.BlockSpec((C, mid), lambda n: (0, 0)),        # w1
                pl.BlockSpec((1, mid), lambda n: (0, 0)),        # b1
                pl.BlockSpec((C, mid), lambda n: (0, 0)),        # w2^T
                pl.BlockSpec((C, 1), lambda n: (0, 0)),          # b2
                pl.BlockSpec((C, C), lambda n: (0, 0)),          # ws^T
                pl.BlockSpec((C, 1), lambda n: (0, 0)),          # bs
            ],
            out_specs=pl.BlockSpec((1, C, HW), lambda n: (n, 0, 0)),
        ),
        compiler_params=pltpu.CompilerParams(
            dimension_semantics=("parallel",)),   # 2-way over N -> both TCs busy on v7x
    )(x, w1_2d, b1_2d, w2t, b2_2d, wst, bs_2d)

    # (N, C, HW) -> NCHW: free view again.
    return out.reshape(N, C, H, W)


def scse_reference(x_nchw, w1, b1, w2, b2, ws, bs):
    """Pure-JAX reference matching the PyTorch module semantics."""
    N, C, H, W = x_nchw.shape
    x = jnp.transpose(x_nchw, (0, 2, 3, 1))                   # NHWC
    mean = jnp.mean(x, axis=(1, 2))                           # (N, C)
    h = jnp.maximum(mean @ w1 + b1, 0.0)                      # (N, mid)
    cse = jax.nn.sigmoid(h @ w2 + b2)                         # (N, C)
    sse = jax.nn.sigmoid(jnp.einsum('nhwc,cd->nhwd', x, ws) + bs)  # (N,H,W,C)
    out = x * cse[:, None, None, :] + x * sse
    return jnp.transpose(out, (0, 3, 1, 2))


if __name__ == "__main__":
    # Module config: SCSEBlock(ch=32, re=16, nlin='relu') -> mid = 2
    N, C, H, W = 2, 32, 16, 16
    re = 16
    mid = C // re

    key = jax.random.PRNGKey(0)
    kx, k1, k2, k3, k4, k5, k6 = jax.random.split(key, 7)

    x = jax.random.normal(kx, (N, C, H, W), dtype=jnp.float32)

    # Deterministic parameter init (shapes follow the 1x1 Conv2d layers; stored as (in, out)).
    w1 = 0.1 * jax.random.normal(k1, (C, mid), dtype=jnp.float32)    # Conv2d(ch, ch//re, 1)
    b1 = 0.1 * jax.random.normal(k2, (mid,), dtype=jnp.float32)
    w2 = 0.1 * jax.random.normal(k3, (mid, C), dtype=jnp.float32)    # Conv2d(ch//re, ch, 1)
    b2 = 0.1 * jax.random.normal(k4, (C,), dtype=jnp.float32)
    ws = 0.1 * jax.random.normal(k5, (C, C), dtype=jnp.float32)      # Conv2d(ch, ch, 1)
    bs = 0.1 * jax.random.normal(k6, (C,), dtype=jnp.float32)

    out = scse_block(x, w1, b1, w2, b2, ws, bs)
    out = jax.block_until_ready(out)

    ref = scse_reference(x, w1, b1, w2, b2, ws, bs)
    assert out.shape == (N, C, H, W)
    assert jnp.allclose(out, ref, atol=1e-5, rtol=1e-5), "mismatch vs reference"

    print("KERNEL_OK")
</pallas_src>

<mosaic_0001>
module attributes {stable_mosaic.version = 11 : i64} {
  func.func @scse_kernel(%arg0: i32, %arg1: memref<1x32x256xf32, #tpu.memory_space<vmem>>, %arg2: memref<32x2xf32, #tpu.memory_space<vmem>>, %arg3: memref<1x2xf32, #tpu.memory_space<vmem>>, %arg4: memref<32x2xf32, #tpu.memory_space<vmem>>, %arg5: memref<32x1xf32, #tpu.memory_space<vmem>>, %arg6: memref<32x32xf32, #tpu.memory_space<vmem>>, %arg7: memref<32x1xf32, #tpu.memory_space<vmem>>, %arg8: memref<1x32x256xf32, #tpu.memory_space<vmem>>) attributes {dimension_semantics = [#tpu.dimension_semantics<parallel>], iteration_bounds = array<i64: 2>, scalar_prefetch = 0 : i64, scratch_operands = 0 : i64, tpu.core_type = #tpu.core_type<tc>, window_params = [{transform_indices = @transform_0, window_bounds = array<i64: 1, 32, 256>}, {pipeline_mode = #tpu.pipeline_mode<synchronous>, transform_indices = @transform_1, window_bounds = array<i64: 32, 2>}, {pipeline_mode = #tpu.pipeline_mode<synchronous>, transform_indices = @transform_2, window_bounds = array<i64: 1, 2>}, {pipeline_mode = #tpu.pipeline_mode<synchronous>, transform_indices = @transform_3, window_bounds = array<i64: 32, 2>}, {pipeline_mode = #tpu.pipeline_mode<synchronous>, transform_indices = @transform_4, window_bounds = array<i64: 32, 1>}, {pipeline_mode = #tpu.pipeline_mode<synchronous>, transform_indices = @transform_5, window_bounds = array<i64: 32, 32>}, {pipeline_mode = #tpu.pipeline_mode<synchronous>, transform_indices = @transform_6, window_bounds = array<i64: 32, 1>}, {transform_indices = @transform_7, window_bounds = array<i64: 1, 32, 256>}]} {
    %c0 = arith.constant 0 : index
    %c0_0 = arith.constant 0 : index
    %c0_1 = arith.constant 0 : index
    %0 = vector.load %arg1[%c0, %c0_0, %c0_1] : memref<1x32x256xf32, #tpu.memory_space<vmem>>, vector<1x32x256xf32>
    %1 = vector.shape_cast %0 : vector<1x32x256xf32> to vector<32x256xf32>
    %cst = arith.constant dense<0.000000e+00> : vector<32xf32>
    %2 = vector.multi_reduction <add>, %1, %cst [1] : vector<32x256xf32> to vector<32xf32>
    %3 = vector.shape_cast %2 : vector<32xf32> to vector<32x1xf32>
    %cst_2 = arith.constant 2.560000e+02 : f32
    %4 = vector.broadcast %cst_2 : f32 to vector<32x1xf32>
    %5 = arith.divf %3, %4 : vector<32x1xf32>
    %c0_3 = arith.constant 0 : index
    %c0_4 = arith.constant 0 : index
    %6 = vector.load %arg2[%c0_3, %c0_4] : memref<32x2xf32, #tpu.memory_space<vmem>>, vector<32x2xf32>
    %7 = vector.broadcast %5 : vector<32x1xf32> to vector<32x2xf32>
    %8 = arith.mulf %7, %6 : vector<32x2xf32>
    %cst_5 = arith.constant dense<0.000000e+00> : vector<2xf32>
    %9 = vector.multi_reduction <add>, %8, %cst_5 [0] : vector<32x2xf32> to vector<2xf32>
    %10 = vector.shape_cast %9 : vector<2xf32> to vector<1x2xf32>
    %c0_6 = arith.constant 0 : index
    %c0_7 = arith.constant 0 : index
    %11 = vector.load %arg3[%c0_6, %c0_7] : memref<1x2xf32, #tpu.memory_space<vmem>>, vector<1x2xf32>
    %12 = arith.addf %10, %11 : vector<1x2xf32>
    %cst_8 = arith.constant 0.000000e+00 : f32
    %13 = vector.broadcast %cst_8 : f32 to vector<1x2xf32>
    %14 = arith.maximumf %12, %13 : vector<1x2xf32>
    %c0_9 = arith.constant 0 : index
    %c0_10 = arith.constant 0 : index
    %15 = vector.load %arg4[%c0_9, %c0_10] : memref<32x2xf32, #tpu.memory_space<vmem>>, vector<32x2xf32>
    %16 = vector.broadcast %14 : vector<1x2xf32> to vector<32x2xf32>
    %17 = arith.mulf %15, %16 : vector<32x2xf32>
    %cst_11 = arith.constant dense<0.000000e+00> : vector<32xf32>
    %18 = vector.multi_reduction <add>, %17, %cst_11 [1] : vector<32x2xf32> to vector<32xf32>
    %19 = vector.shape_cast %18 : vector<32xf32> to vector<32x1xf32>
    %c0_12 = arith.constant 0 : index
    %c0_13 = arith.constant 0 : index
    %20 = vector.load %arg5[%c0_12, %c0_13] : memref<32x1xf32, #tpu.memory_space<vmem>>, vector<32x1xf32>
    %21 = arith.addf %19, %20 : vector<32x1xf32>
    %cst_14 = arith.constant 0.000000e+00 : f32
    %22 = vector.broadcast %cst_14 : f32 to vector<32x1xf32>
    %23 = arith.subf %22, %21 : vector<32x1xf32>
    %24 = math.exp %23 : vector<32x1xf32>
    %cst_15 = arith.constant 1.000000e+00 : f32
    %25 = vector.broadcast %cst_15 : f32 to vector<32x1xf32>
    %26 = arith.addf %25, %24 : vector<32x1xf32>
    %cst_16 = arith.constant 1.000000e+00 : f32
    %27 = vector.broadcast %cst_16 : f32 to vector<32x1xf32>
    %28 = arith.divf %27, %26 : vector<32x1xf32>
    %c0_17 = arith.constant 0 : index
    %c0_18 = arith.constant 0 : index
    %29 = vector.load %arg6[%c0_17, %c0_18] : memref<32x32xf32, #tpu.memory_space<vmem>>, vector<32x32xf32>
    %cst_19 = arith.constant dense<0.000000e+00> : vector<32x256xf32>
    %30 = tpu.matmul %29, %1, %cst_19 {dimension_numbers = #tpu.dot_dimension_numbers<[1], [0], [0], [1], [0, 0, 1, 1], [], []>} : vector<32x32xf32>, vector<32x256xf32>, vector<32x256xf32> -> vector<32x256xf32>
    %c0_20 = arith.constant 0 : index
    %c0_21 = arith.constant 0 : index
    %31 = vector.load %arg7[%c0_20, %c0_21] : memref<32x1xf32, #tpu.memory_space<vmem>>, vector<32x1xf32>
    %32 = vector.broadcast %31 : vector<32x1xf32> to vector<32x256xf32>
    %33 = arith.addf %30, %32 : vector<32x256xf32>
    %cst_22 = arith.constant 0.000000e+00 : f32
    %34 = vector.broadcast %cst_22 : f32 to vector<32x256xf32>
    %35 = arith.subf %34, %33 : vector<32x256xf32>
    %36 = math.exp %35 : vector<32x256xf32>
    %cst_23 = arith.constant 1.000000e+00 : f32
    %37 = vector.broadcast %cst_23 : f32 to vector<32x256xf32>
    %38 = arith.addf %37, %36 : vector<32x256xf32>
    %cst_24 = arith.constant 1.000000e+00 : f32
    %39 = vector.broadcast %cst_24 : f32 to vector<32x256xf32>
    %40 = arith.divf %39, %38 : vector<32x256xf32>
    %41 = vector.broadcast %28 : vector<32x1xf32> to vector<32x256xf32>
    %42 = arith.addf %41, %40 : vector<32x256xf32>
    %43 = arith.mulf %1, %42 : vector<32x256xf32>
    %c0_25 = arith.constant 0 : index
    %c0_26 = arith.constant 0 : index
    %c0_27 = arith.constant 0 : index
    %44 = vector.load %arg8[%c0_25, %c0_26, %c0_27] : memref<1x32x256xf32, #tpu.memory_space<vmem>>, vector<1x32x256xf32>
    %45 = vector.shape_cast %44 : vector<1x32x256xf32> to vector<32x256xf32>
    %46 = vector.shape_cast %43 : vector<32x256xf32> to vector<1x32x256xf32>
    tpu.vector_store %arg8[%c0_25, %c0_26, %c0_27], %46 {strides = array<i32>} : memref<1x32x256xf32, #tpu.memory_space<vmem>>, vector<1x32x256xf32>,
    return
  }
  func.func @transform_0(%arg0: i32) -> (i32, i32, i32) {
    %c0_i32 = arith.constant 0 : i32
    %c0_i32_0 = arith.constant 0 : i32
    %c0_i32_1 = arith.constant 0 : i32
    return %arg0, %c0_i32, %c0_i32_0 : i32, i32, i32
  }
  func.func @transform_1(%arg0: i32) -> (i32, i32) {
    %c0_i32 = arith.constant 0 : i32
    %c0_i32_0 = arith.constant 0 : i32
    %c0_i32_1 = arith.constant 0 : i32
    return %c0_i32, %c0_i32_0 : i32, i32
  }
  func.func @transform_2(%arg0: i32) -> (i32, i32) {
    %c0_i32 = arith.constant 0 : i32
    %c0_i32_0 = arith.constant 0 : i32
    %c0_i32_1 = arith.constant 0 : i32
    return %c0_i32, %c0_i32_0 : i32, i32
  }
  func.func @transform_3(%arg0: i32) -> (i32, i32) {
    %c0_i32 = arith.constant 0 : i32
    %c0_i32_0 = arith.constant 0 : i32
    %c0_i32_1 = arith.constant 0 : i32
    return %c0_i32, %c0_i32_0 : i32, i32
  }
  func.func @transform_4(%arg0: i32) -> (i32, i32) {
    %c0_i32 = arith.constant 0 : i32
    %c0_i32_0 = arith.constant 0 : i32
    %c0_i32_1 = arith.constant 0 : i32
    return %c0_i32, %c0_i32_0 : i32, i32
  }
  func.func @transform_5(%arg0: i32) -> (i32, i32) {
    %c0_i32 = arith.constant 0 : i32
    %c0_i32_0 = arith.constant 0 : i32
    %c0_i32_1 = arith.constant 0 : i32
    return %c0_i32, %c0_i32_0 : i32, i32
  }
  func.func @transform_6(%arg0: i32) -> (i32, i32) {
    %c0_i32 = arith.constant 0 : i32
    %c0_i32_0 = arith.constant 0 : i32
    %c0_i32_1 = arith.constant 0 : i32
    return %c0_i32, %c0_i32_0 : i32, i32
  }
  func.func @transform_7(%arg0: i32) -> (i32, i32, i32) {
    %c0_i32 = arith.constant 0 : i32
    %c0_i32_0 = arith.constant 0 : i32
    %c0_i32_1 = arith.constant 0 : i32
    return %arg0, %c0_i32, %c0_i32_0 : i32, i32, i32
  }
}

</mosaic_0001>

<llo_original>
// kernel: tpu_custom_call.1
$region0: #{tpu_custom_call.1}
  #allocation0 [shape = 'u32[]', space=smem, size = 0x4, offset = 0x4, fixed_abs, tag = 'smem constant byte address 0x4 - core index']
  #allocation1 [shape = 'u32[72,128]{1,0:T(1,128)}', space=vmem, size = 0x9000, scoped, tag = 'internal scratch']
  %s0 = inlined_call_operand.hbm [shape: f32[2,32,256], index: 0, kind: input, shape index: {}]
  %s1 = inlined_call_operand.vmem [shape: f32[32,2], index: 1, kind: input, shape index: {}]
  %s2 = inlined_call_operand.vmem [shape: f32[1,2], index: 2, kind: input, shape index: {}]
  %s3 = inlined_call_operand.vmem [shape: f32[32,2], index: 3, kind: input, shape index: {}]
  %s4 = inlined_call_operand.vmem [shape: f32[32,1], index: 4, kind: input, shape index: {}]
  %s5 = inlined_call_operand.vmem [shape: f32[32,32], index: 5, kind: input, shape index: {}]
  %s6 = inlined_call_operand.vmem [shape: f32[32,1], index: 6, kind: input, shape index: {}]
  %s7 = inlined_call_operand.hbm [shape: f32[2,32,256], index: 7, kind: output, shape index: {}]
  %s8 = sld [smem:[#allocation0]]
  $region65: #{tpu_custom_call.1} parent=0
    _
  %s10 = ssub.s32 1, %s8
  %s11 = scalar_select 0, %s10, %s8
  $region1: #{tpu_custom_call.1} parent=0
    #allocation2 [shape = 'u8[65536]{0}', space=vmem, size = 0x10000, scoped, tag = 'input window, operand 0']
    #allocation3 [shape = 's32[2]{0}', space=sflag, size = 0x8, scoped, tag = 'scoped memory for tpu_custom_call.1']
    #allocation4 [shape = 's32[2]{0}', space=sflag, size = 0x8, scoped, tag = 'scoped memory for tpu_custom_call.1']
    #allocation5 [shape = 'u8[65536]{0}', space=vmem, size = 0x10000, scoped, tag = 'output window, operand 0']
    %12 = vsyncpa [#allocation3], 0
    %s13 = scalar_lea.sflag [#allocation3], 1
    %14 = vsyncpa %s13, 0
    %15 = vsyncpa [#allocation4], 0
    %s16 = scalar_lea.sflag [#allocation4], 1
    %17 = vsyncpa %s16, 0
    loop: start=0, step=1, limit=4
    $region2: #{tpu_custom_call.1} parent=1 // loop_pre_header
      _
    $region3: #{tpu_custom_call.1} parent=1 // loop_header
      %s19 = sphi 0, %s23
      %p20 = scmp.ge.s32.totalorder %s19, 4
      %s29 = sphi 0, %s31
      %s32 = sphi 0, %s29
      %s33 = sphi 0, %s32
      %s49 = sphi 0, %s33
      %s53 = sphi 0, %s53
      %s55 = sphi 0, %s53
      %s56 = sphi 0, %s55
      %s70 = sphi 0, %s56
      %s74 = sphi 0, %s74
      %s76 = sphi 0, %s74
      %s77 = sphi 0, %s76
      %s91 = sphi 0, %s77
      %s95 = sphi 0, %s95
      %s97 = sphi 0, %s95
      %s98 = sphi 0, %s97
      %s112 = sphi 0, %s98
      %s116 = sphi 0, %s116
      %s118 = sphi 0, %s116
      %s119 = sphi 0, %s118
      %s133 = sphi 0, %s119
      %s137 = sphi 0, %s137
      %s139 = sphi 0, %s137
      %s140 = sphi 0, %s139
      %s154 = sphi 0, %s140
      %s158 = sphi 0, %s158
      %s160 = sphi 0, %s158
      %s161 = sphi 0, %s160
      %s175 = sphi 0, %s161
      %s181 = sphi 0, %s183
      %s184 = sphi 0, %s181
      %s185 = sphi 0, %s184
      %s201 = sphi 0, %s185
    $region4: #{tpu_custom_call.1} parent=1 // loop_header_branch
      %22 = sbr.rel (%p20) target = $region8
    $region5: #{tpu_custom_call.1} parent=1 // loop_body
      %s24 = ssub.s32 %s19, 1
      %s25 = ssub.s32 %s19, 2
      %s26 = sadd.s32 %s19, 1
      %s27 = ssub.s32 %s19, %s26
      %p28 = scmp.eq.s32.totalorder %s27, 0
      %s30 = sadd.s32 %s29, 1
      %s31 = scalar_select %p28, %s29, %s30
      %p34 = pneg %p28
      %p35 = scmp.eq.s32.totalorder %s19, 1
      %p36 = por %p34, %p35
      %p37 = scmp.ne.s32.totalorder %s29, %s32
      %p38 = scmp.eq.s32.totalorder %s19, 0
      %p39 = por %p37, %p38
      %p40 = scmp.ne.s32.totalorder %s29, %s32
      %p41 = scmp.eq.s32.totalorder %s24, 1
      %p42 = por %p40, %p41
      %p43 = scmp.ne.s32.totalorder %s32, %s33
      %p44 = scmp.eq.s32.totalorder %s24, 0
      %p45 = por %p43, %p44
      %p46 = scmp.ne.s32.totalorder %s32, %s33
      %p47 = scmp.eq.s32.totalorder %s25, 1
      %p48 = por %p46, %p47
      %p50 = scmp.ne.s32.totalorder %s33, %s49
      %p51 = scmp.eq.s32.totalorder %s25, 0
      %p52 = por %p50, %p51
      %s54 = sadd.s32 %s53, 1
      %p57 = scmp.eq.s32.totalorder %s19, 1
      %p58 = scmp.ne.s32.totalorder %s53, %s55
      %p59 = scmp.eq.s32.totalorder %s19, 0
      %p60 = por %p58, %p59
      %p61 = scmp.ne.s32.totalorder %s53, %s55
      %p62 = scmp.eq.s32.totalorder %s24, 1
      %p63 = por %p61, %p62
      %p64 = scmp.ne.s32.totalorder %s55, %s56
      %p65 = scmp.eq.s32.totalorder %s24, 0
      %p66 = por %p64, %p65
      %p67 = scmp.ne.s32.totalorder %s55, %s56
      %p68 = scmp.eq.s32.totalorder %s25, 1
      %p69 = por %p67, %p68
      %p71 = scmp.ne.s32.totalorder %s56, %s70
      %p72 = scmp.eq.s32.totalorder %s25, 0
      %p73 = por %p71, %p72
      %s75 = sadd.s32 %s74, 1
      %p78 = scmp.eq.s32.totalorder %s19, 1
      %p79 = scmp.ne.s32.totalorder %s74, %s76
      %p80 = scmp.eq.s32.totalorder %s19, 0
      %p81 = por %p79, %p80
      %p82 = scmp.ne.s32.totalorder %s74, %s76
      %p83 = scmp.eq.s32.totalorder %s24, 1
      %p84 = por %p82, %p83
      %p85 = scmp.ne.s32.totalorder %s76, %s77
      %p86 = scmp.eq.s32.totalorder %s24, 0
      %p87 = por %p85, %p86
      %p88 = scmp.ne.s32.totalorder %s76, %s77
      %p89 = scmp.eq.s32.totalorder %s25, 1
      %p90 = por %p88, %p89
      %p92 = scmp.ne.s32.totalorder %s77, %s91
      %p93 = scmp.eq.s32.totalorder %s25, 0
      %p94 = por %p92, %p93
      %s96 = sadd.s32 %s95, 1
      %p99 = scmp.eq.s32.totalorder %s19, 1
      %p100 = scmp.ne.s32.totalorder %s95, %s97
      %p101 = scmp.eq.s32.totalorder %s19, 0
      %p102 = por %p100, %p101
      %p103 = scmp.ne.s32.totalorder %s95, %s97
      %p104 = scmp.eq.s32.totalorder %s24, 1
      %p105 = por %p103, %p104
      %p106 = scmp.ne.s32.totalorder %s97, %s98
      %p107 = scmp.eq.s32.totalorder %s24, 0
      %p108 = por %p106, %p107
      %p109 = scmp.ne.s32.totalorder %s97, %s98
      %p110 = scmp.eq.s32.totalorder %s25, 1
      %p111 = por %p109, %p110
      %p113 = scmp.ne.s32.totalorder %s98, %s112
      %p114 = scmp.eq.s32.totalorder %s25, 0
      %p115 = por %p113, %p114
      %s117 = sadd.s32 %s116, 1
      %p120 = scmp.eq.s32.totalorder %s19, 1
      %p121 = scmp.ne.s32.totalorder %s116, %s118
      %p122 = scmp.eq.s32.totalorder %s19, 0
      %p123 = por %p121, %p122
      %p124 = scmp.ne.s32.totalorder %s116, %s118
      %p125 = scmp.eq.s32.totalorder %s24, 1
      %p126 = por %p124, %p125
      %p127 = scmp.ne.s32.totalorder %s118, %s119
      %p128 = scmp.eq.s32.totalorder %s24, 0
      %p129 = por %p127, %p128
      %p130 = scmp.ne.s32.totalorder %s118, %s119
      %p131 = scmp.eq.s32.totalorder %s25, 1
      %p132 = por %p130, %p131
      %p134 = scmp.ne.s32.totalorder %s119, %s133
      %p135 = scmp.eq.s32.totalorder %s25, 0
      %p136 = por %p134, %p135
      %s138 = sadd.s32 %s137, 1
      %p141 = scmp.eq.s32.totalorder %s19, 1
      %p142 = scmp.ne.s32.totalorder %s137, %s139
      %p143 = scmp.eq.s32.totalorder %s19, 0
      %p144 = por %p142, %p143
      %p145 = scmp.ne.s32.totalorder %s137, %s139
      %p146 = scmp.eq.s32.totalorder %s24, 1
      %p147 = por %p145, %p146
      %p148 = scmp.ne.s32.totalorder %s139, %s140
      %p149 = scmp.eq.s32.totalorder %s24, 0
      %p150 = por %p148, %p149
      %p151 = scmp.ne.s32.totalorder %s139, %s140
      %p152 = scmp.eq.s32.totalorder %s25, 1
      %p153 = por %p151, %p152
      %p155 = scmp.ne.s32.totalorder %s140, %s154
      %p156 = scmp.eq.s32.totalorder %s25, 0
      %p157 = por %p155, %p156
      %s159 = sadd.s32 %s158, 1
      %p162 = scmp.eq.s32.totalorder %s19, 1
      %p163 = scmp.ne.s32.totalorder %s158, %s160
      %p164 = scmp.eq.s32.totalorder %s19, 0
      %p165 = por %p163, %p164
      %p166 = scmp.ne.s32.totalorder %s158, %s160
      %p167 = scmp.eq.s32.totalorder %s24, 1
      %p168 = por %p166, %p167
      %p169 = scmp.ne.s32.totalorder %s160, %s161
      %p170 = scmp.eq.s32.totalorder %s24, 0
      %p171 = por %p169, %p170
      %p172 = scmp.ne.s32.totalorder %s160, %s161
      %p173 = scmp.eq.s32.totalorder %s25, 1
      %p174 = por %p172, %p173
      %p176 = scmp.ne.s32.totalorder %s161, %s175
      %p177 = scmp.eq.s32.totalorder %s25, 0
      %p178 = por %p176, %p177
      %s179 = ssub.s32 %s19, %s26
      %p180 = scmp.eq.s32.totalorder %s179, 0
      %s182 = sadd.s32 %s181, 1
      %s183 = scalar_select %p180, %s181, %s182
      %p186 = pneg %p180
      %p187 = scmp.eq.s32.totalorder %s19, 1
      %p188 = por %p186, %p187
      %p189 = scmp.ne.s32.totalorder %s181, %s184
      %p190 = scmp.eq.s32.totalorder %s19, 0
      %p191 = por %p189, %p190
      %p192 = scmp.ne.s32.totalorder %s181, %s184
      %p193 = scmp.eq.s32.totalorder %s24, 1
      %p194 = por %p192, %p193
      %p195 = scmp.ne.s32.totalorder %s184, %s185
      %p196 = scmp.eq.s32.totalorder %s24, 0
      %p197 = por %p195, %p196
      %p198 = scmp.ne.s32.totalorder %s184, %s185
      %p199 = scmp.eq.s32.totalorder %s25, 1
      %p200 = por %p198, %p199
      %p202 = scmp.ne.s32.totalorder %s185, %s201
      %p203 = scmp.eq.s32.totalorder %s25, 0
      %p204 = por %p202, %p203
      %p205 = scmp.le.s32.totalorder 1, %s19
      %p206 = scmp.lt.s32.totalorder %s19, 3
      %p207 = pnand %p205, %p206
      %p208 = pneg %p207
      // Predicated region
      $region9: #{tpu_custom_call.1} parent=5 // pred_check
        _
      $region10: #{tpu_custom_call.1} parent=5 // pred_check_branch
        %210 = sbr.rel (%p207) target = $region12
      $region11: #{tpu_custom_call.1} parent=5 // pred_region
        %s211 = ssub.s32 %s19, 1
        // Predicated region
        $region13: #{tpu_custom_call.1} parent=11 // pred_check
          %p212 = pneg %p66
        $region14: #{tpu_custom_call.1} parent=11 // pred_check_branch
          %214 = sbr.rel (%p212) target = $region16
        $region15: #{tpu_custom_call.1} parent=11 // pred_region
          _
        $region16: #{tpu_custom_call.1} parent=11 // pred_fallthru
          _
        // Predicated region
        $region17: #{tpu_custom_call.1} parent=11 // pred_check
          %p215 = pneg %p87
        $region18: #{tpu_custom_call.1} parent=11 // pred_check_branch
          %217 = sbr.rel (%p215) target = $region20
        $region19: #{tpu_custom_call.1} parent=11 // pred_region
          _
        $region20: #{tpu_custom_call.1} parent=11 // pred_fallthru
          _
        // Predicated region
        $region21: #{tpu_custom_call.1} parent=11 // pred_check
          %p218 = pneg %p108
        $region22: #{tpu_custom_call.1} parent=11 // pred_check_branch
          %220 = sbr.rel (%p218) target = $region24
        $region23: #{tpu_custom_call.1} parent=11 // pred_region
          _
        $region24: #{tpu_custom_call.1} parent=11 // pred_fallthru
          _
        // Predicated region
        $region25: #{tpu_custom_call.1} parent=11 // pred_check
          %p221 = pneg %p129
        $region26: #{tpu_custom_call.1} parent=11 // pred_check_branch
          %223 = sbr.rel (%p221) target = $region28
        $region27: #{tpu_custom_call.1} parent=11 // pred_region
          _
        $region28: #{tpu_custom_call.1} parent=11 // pred_fallthru
          _
        // Predicated region
        $region29: #{tpu_custom_call.1} parent=11 // pred_check
          %p224 = pneg %p150
        $region30: #{tpu_custom_call.1} parent=11 // pred_check_branch
          %226 = sbr.rel (%p224) target = $region32
        $region31: #{tpu_custom_call.1} parent=11 // pred_region
          _
        $region32: #{tpu_custom_call.1} parent=11 // pred_fallthru
          _
        // Predicated region
        $region33: #{tpu_custom_call.1} parent=11 // pred_check
          %p227 = pneg %p171
        $region34: #{tpu_custom_call.1} parent=11 // pred_check_branch
          %229 = sbr.rel (%p227) target = $region36
        $region35: #{tpu_custom_call.1} parent=11 // pred_region
          _
        $region36: #{tpu_custom_call.1} parent=11 // pred_fallthru
          _
      $region12: #{tpu_custom_call.1} parent=5 // pred_fallthru
        _
      %p230 = scmp.lt.s32.totalorder %s19, 2
      // Predicated region
      $region37: #{tpu_custom_call.1} parent=5 // pred_check
        %p231 = pneg %p230
      $region38: #{tpu_custom_call.1} parent=5 // pred_check_branch
        %233 = sbr.rel (%p231) target = $region40
      $region39: #{tpu_custom_call.1} parent=5 // pred_region
        // Predicated region
        $region41: #{tpu_custom_call.1} parent=39 // pred_check
          %p234 = pneg %p39
        $region42: #{tpu_custom_call.1} parent=39 // pred_check_branch
          %236 = sbr.rel (%p234) target = $region44
        $region43: #{tpu_custom_call.1} parent=39 // pred_region
          %s237 = sand.u32 %s29, 1
          %s238 = scalar_lea.sflag [#allocation3], %s237
          %s239 = sand.u32 %s29, 1
          %s240 = smul.addr %s239, 64
          %s241 = scalar_lea.vmem [#allocation2], %s240
          %243 = vsyncadd %s238, 0
          %s244 = smul.addr %s19, 8
          %s245 = smul.addr %s244, 8
          %s246 = scalar_lea.hbm %s0, %s245
          %s247 = sshll.u32 %s246, 4
          %s248 = int_to_ptr.hbm [resolvable:$true] %s247
          %s249 = sshll.u32 %s241, 4
          %s250 = int_to_ptr.vmem [resolvable:$true] %s249
          %255 = dma.hbm_to_vmem [thread:$0]  %s248, 1024, %s250, %s238, 256, 256, 16
        $region44: #{tpu_custom_call.1} parent=39 // pred_fallthru
          _
      $region40: #{tpu_custom_call.1} parent=5 // pred_fallthru
        _
      %p256 = scmp.le.s32.totalorder 1, %s19
      %p257 = scmp.lt.s32.totalorder %s19, 3
      %p258 = pnand %p256, %p257
      %p259 = pneg %p258
      // Predicated region
      $region45: #{tpu_custom_call.1} parent=5 // pred_check
        _
      $region46: #{tpu_custom_call.1} parent=5 // pred_check_branch
        %261 = sbr.rel (%p258) target = $region48
      $region47: #{tpu_custom_call.1} parent=5 // pred_region
        %s262 = ssub.s32 %s19, 1
        %s263 = sand.u32 %s32, 1
        %s264 = scalar_lea.sflag [#allocation3], %s263
        %s265 = sand.u32 %s32, 1
        %s266 = smul.addr %s265, 64
        %s267 = scalar_lea.vmem [#allocation2], %s266
        // Predicated region
        $region49: #{tpu_custom_call.1} parent=47 // pred_check
          %p268 = pneg %p45
        $region50: #{tpu_custom_call.1} parent=47 // pred_check_branch
          %270 = sbr.rel (%p268) target = $region52
        $region51: #{tpu_custom_call.1} parent=47 // pred_region
          %272 = dma.done %s264, 1024
        $region52: #{tpu_custom_call.1} parent=47 // pred_fallthru
          _
        %s273 = sand.u32 %s32, 1
        %s274 = scalar_lea.sflag [#allocation3], %s273
        %s275 = sand.u32 %s32, 1
        %s276 = smul.addr %s275, 64
        %s277 = scalar_lea.vmem [#allocation2], %s276
        %p278 = pneg %p45
        %p279 = pneg %p42
        %p280 = pneg %p66
        %p281 = pneg %p63
        %p282 = pneg %p87
        %p283 = pneg %p84
        %p284 = pneg %p108
        %p285 = pneg %p105
        %p286 = pneg %p129
        %p287 = pneg %p126
        %p288 = pneg %p150
        %p289 = pneg %p147
        %p290 = pneg %p171
        %p291 = pneg %p168
        %p292 = pneg %p197
        %p293 = pneg %p194
        %s294 = sand.u32 %s184, 1
        %s295 = scalar_lea.sflag [#allocation4], %s294
        %s296 = sand.u32 %s184, 1
        %s297 = smul.addr %s296, 64
        %s298 = scalar_lea.vmem [#allocation5], %s297
        %v299 = vld [vmem:[%s267] sm:$0xff]
        %v300 = vld [vmem:[%s267 + $0x8] sm:$0xff]
        %v301 = vld [vmem:[%s267 + $0x10] sm:$0xff]
        %v302 = vld [vmem:[%s267 + $0x18] sm:$0xff]
        %v303 = vld [vmem:[%s267 + $0x20] sm:$0xff]
        %v304 = vld [vmem:[%s267 + $0x28] sm:$0xff]
        %v305 = vld [vmem:[%s267 + $0x30] sm:$0xff]
        %v306 = vld [vmem:[%s267 + $0x38] sm:$0xff]
        %v307 = vadd.f32 %v299, %v300
        %308 = vadd.xlane.f32.xlu0 %v307
        %v309 = vpop.xlane.xlu0 %308
        %v310 = vadd.f32 %v301, %v302
        %311 = vadd.xlane.f32.xlu0 %v310
        %v312 = vpop.xlane.xlu0 %311
        %v313 = vadd.f32 %v303, %v304
        %314 = vadd.xlane.f32.xlu0 %v313
        %v315 = vpop.xlane.xlu0 %314
        %v316 = vadd.f32 %v305, %v306
        %317 = vadd.xlane.f32.xlu0 %v316
        %v318 = vpop.xlane.xlu0 %317
        %v319 = vrcp.pop 256.0
        %v320 = vmul.f32 256.0, %v319
        %v321 = vsub.f32 1.0, %v320
        %v322 = vmul.f32 %v319, %v321
        %v323 = vadd.f32 %v319, %v322
        %vm324 = vweird.f32 %v319
        %v325 = vsel %vm324, %v319, %v323
        %v326 = vmul.f32 %v309, %v325
        %v327 = vmul.f32 %v312, %v325
        %v328 = vmul.f32 %v315, %v325
        %v329 = vmul.f32 %v318, %v325
        %v330 = vld [vmem:[%s1] sm:$0xff]
        %v331 = vld [vmem:[%s1 + $0x8] sm:$0xff]
        %v332 = vld [vmem:[%s1 + $0x10] sm:$0xff]
        %v333 = vld [vmem:[%s1 + $0x18] sm:$0xff]
        %v334 = vmul.f32 %v326, %v330
        %v335 = vmul.f32 %v327, %v331
        %v336 = vmul.f32 %v328, %v332
        %v337 = vmul.f32 %v329, %v333
        %vm338 = vcmask 15360
        %v339 = vsel %vm338, %v334, 0.0
        %v340 = vsel %vm338, %v335, 0.0
        %v341 = vadd.f32 %v339, %v340
        %v342 = vsel %vm338, %v336, 0.0
        %v343 = vadd.f32 %v341, %v342
        %v344 = vsel %vm338, %v337, 0.0
        %v345 = vadd.f32 %v343, %v344
        %v346 = vrot.slane %v345, 4
        %v347 = vadd.f32 %v345, %v346
        %v348 = vrot.slane %v347, 2
        %v349 = vadd.f32 %v347, %v348
        %v350 = vrot.slane %v349, 1
        %v351 = vadd.f32 %v349, %v350
        %v352 = vld [vmem:[%s2] sm:$0x1]
        %v353 = vadd.f32 %v351, %v352
        %v354 = vmax.f32 %v353, 0.0
        %v355 = vld [vmem:[%s3] sm:$0xff]
        %v356 = vld [vmem:[%s3 + $0x8] sm:$0xff]
        %v357 = vld [vmem:[%s3 + $0x10] sm:$0xff]
        %v358 = vld [vmem:[%s3 + $0x18] sm:$0xff]
        %v359 = vperm.slane %v354, 0
        %v360 = vmul.f32 %v355, %v359
        %v361 = vmul.f32 %v356, %v359
        %v362 = vmul.f32 %v357, %v359
        %v363 = vmul.f32 %v358, %v359
        %v364 = vsel %vm338, %v360, 0.0
        %365 = vadd.xlane.f32.xlu0 %v364
        %v366 = vpop.xlane.xlu0 %365
        %v367 = vsel %vm338, %v361, 0.0
        %368 = vadd.xlane.f32.xlu0 %v367
        %v369 = vpop.xlane.xlu0 %368
        %v370 = vsel %vm338, %v362, 0.0
        %371 = vadd.xlane.f32.xlu0 %v370
        %v372 = vpop.xlane.xlu0 %371
        %v373 = vsel %vm338, %v363, 0.0
        %374 = vadd.xlane.f32.xlu0 %v373
        %v375 = vpop.xlane.xlu0 %374
        %v376 = vld [vmem:[%s4] sm:$0xff]
        %v377 = vld [vmem:[%s4 + $0x8] sm:$0xff]
        %v378 = vld [vmem:[%s4 + $0x10] sm:$0xff]
        %v379 = vld [vmem:[%s4 + $0x18] sm:$0xff]
        %v380 = vadd.f32 %v366, %v376
        %v381 = vadd.f32 %v369, %v377
        %v382 = vadd.f32 %v372, %v378
        %v383 = vadd.f32 %v375, %v379
        %v384 = vsub.f32 0.0, %v380
        %v385 = vsub.f32 0.0, %v381
        %v386 = vsub.f32 0.0, %v382
        %v387 = vsub.f32 0.0, %v383
        %v388 = vmul.f32 %v384, 1.442695
        %v389 = vpow.pop %v388
        %v390 = vmul.f32 %v385, 1.442695
        %v391 = vpow.pop %v390
        %v392 = vmul.f32 %v386, 1.442695
        %v393 = vpow.pop %v392
        %v394 = vmul.f32 %v387, 1.442695
        %v395 = vpow.pop %v394
        %v396 = vadd.f32 %v389, 1.0
        %v397 = vadd.f32 %v391, 1.0
        %v398 = vadd.f32 %v393, 1.0
        %v399 = vadd.f32 %v395, 1.0
        %v400 = vrcp.pop %v396
        %v401 = vmul.f32 %v396, %v400
        %v402 = vsub.f32 1.0, %v401
        %v403 = vmul.f32 %v400, %v402
        %v404 = vadd.f32 %v400, %v403
        %vm405 = vweird.f32 %v396
        %vm406 = vweird.f32 %v400
        %vm407 = vmor %vm405, %vm406
        %v408 = vsel %vm407, %v400, %v404
        %v409 = vand.u32 2147483647, %v396
        %vm410 = vcmp.eq.f32.partialorder %v409, 8.507059e+37
        %v411 = vand.u32 %v396, 2147483648
        %v412 = vor.u32 1.1754944e-38, %v411
        %v413 = vsel %vm410, %v412, %v408
        %v414 = vmul.f32 1.0, %v413
        %v415 = vrcp.pop %v397
        %v416 = vmul.f32 %v397, %v415
        %v417 = vsub.f32 1.0, %v416
        %v418 = vmul.f32 %v415, %v417
        %v419 = vadd.f32 %v415, %v418
        %vm420 = vweird.f32 %v397
        %vm421 = vweird.f32 %v415
        %vm422 = vmor %vm420, %vm421
        %v423 = vsel %vm422, %v415, %v419
        %v424 = vand.u32 2147483647, %v397
        %vm425 = vcmp.eq.f32.partialorder %v424, 8.507059e+37
        %v426 = vand.u32 %v397, 2147483648
        %v427 = vor.u32 1.1754944e-38, %v426
        %v428 = vsel %vm425, %v427, %v423
        %v429 = vmul.f32 1.0, %v428
        %v430 = vrcp.pop %v398
        %v431 = vmul.f32 %v398, %v430
        %v432 = vsub.f32 1.0, %v431
        %v433 = vmul.f32 %v430, %v432
        %v434 = vadd.f32 %v430, %v433
        %vm435 = vweird.f32 %v398
        %vm436 = vweird.f32 %v430
        %vm437 = vmor %vm435, %vm436
        %v438 = vsel %vm437, %v430, %v434
        %v439 = vand.u32 2147483647, %v398
        %vm440 = vcmp.eq.f32.partialorder %v439, 8.507059e+37
        %v441 = vand.u32 %v398, 2147483648
        %v442 = vor.u32 1.1754944e-38, %v441
        %v443 = vsel %vm440, %v442, %v438
        %v444 = vmul.f32 1.0, %v443
        %v445 = vrcp.pop %v399
        %v446 = vmul.f32 %v399, %v445
        %v447 = vsub.f32 1.0, %v446
        %v448 = vmul.f32 %v445, %v447
        %v449 = vadd.f32 %v445, %v448
        %vm450 = vweird.f32 %v399
        %vm451 = vweird.f32 %v445
        %vm452 = vmor %vm450, %vm451
        %v453 = vsel %vm452, %v445, %v449
        %v454 = vand.u32 2147483647, %v399
        %vm455 = vcmp.eq.f32.partialorder %v454, 8.507059e+37
        %v456 = vand.u32 %v399, 2147483648
        %v457 = vor.u32 1.1754944e-38, %v456
        %v458 = vsel %vm455, %v457, %v453
        %v459 = vmul.f32 1.0, %v458
        %v460 = vld [vmem:[%s5] sm:$0xff]
        %v461 = vld [vmem:[%s5 + $0x8] sm:$0xff]
        %v462 = vld [vmem:[%s5 + $0x10] sm:$0xff]
        %v463 = vld [vmem:[%s5 + $0x18] sm:$0xff]
        %v464 = vld [vmem:[%s6] sm:$0xff]
        %v465 = vld [vmem:[%s6 + $0x8] sm:$0xff]
        %v466 = vld [vmem:[%s6 + $0x10] sm:$0xff]
        %v467 = vld [vmem:[%s6 + $0x18] sm:$0xff]
        %469 = vset.pattern.permute.xlu0 0
        %470 = vperm.xlu0 %469, %v464
        %v471 = vpop.permute.xlu0 %470
        %474 = vset.pattern.permute.xlu0 0
        %475 = vperm.xlu0 %474, %v465
        %v476 = vpop.permute.xlu0 %475
        %479 = vset.pattern.permute.xlu0 0
        %480 = vperm.xlu0 %479, %v466
        %v481 = vpop.permute.xlu0 %480
        %484 = vset.pattern.permute.xlu0 0
        %485 = vperm.xlu0 %484, %v467
        %v486 = vpop.permute.xlu0 %485
        %vm488 = vcmask 261120
        %v490 = vsel %vm488, %v460, 0
        %v493 = vsel %vm488, %v461, 0
        %v496 = vsel %vm488, %v462, 0
        %v499 = vsel %vm488, %v463, 0
        %501 = vmatpush.msra.mxu0 0.0
        %502 = vmatpush.msra.mxu0 0.0
        %503 = vmatpush.msra.mxu0 0.0
        %504 = vmatpush.msra.mxu0 0.0
        %505 = vmatpush.msra.mxu0 0.0
        %506 = vmatpush.msra.mxu0 0.0
        %507 = vmatpush.msra.mxu0 0.0
        %508 = vmatpush.msra.mxu0 0.0
        %509 = vmatpush.msra.mxu0 0.0
        %510 = vmatpush.msra.mxu0 0.0
        %511 = vmatpush.msra.mxu0 0.0
        %512 = vmatpush.msra.mxu0 0.0
        %513 = vmatpush.msra.mxu0 %v305
        %514 = vmatpush.msra.mxu0 %v303
        %515 = vmatpush.msra.mxu0 %v301
        %516 = vmatpush.msra.mxu0 %v299
        %517 = vmatmul.f32.gmra.mxu0 %v490
        %v518 = vpop.f32.mrf.mxu0
        %v519 = vadd.f32 %v471, %v518
        %520 = vmatmul.f32.gmra.mxu0 %v493
        %v521 = vpop.f32.mrf.mxu0
        %v522 = vadd.f32 %v476, %v521
        %523 = vmatmul.f32.gmra.mxu0 %v496
        %v524 = vpop.f32.mrf.mxu0
        %v525 = vadd.f32 %v481, %v524
        %526 = vmatmul.f32.gmra.mxu0 %v499
        %v527 = vpop.f32.mrf.mxu0
        %v528 = vadd.f32 %v486, %v527
        %529 = vdwg.mxu0
        %530 = vmatpush.msra.mxu0 0.0
        %531 = vmatpush.msra.mxu0 0.0
        %532 = vmatpush.msra.mxu0 0.0
        %533 = vmatpush.msra.mxu0 0.0
        %534 = vmatpush.msra.mxu0 0.0
        %535 = vmatpush.msra.mxu0 0.0
        %536 = vmatpush.msra.mxu0 0.0
        %537 = vmatpush.msra.mxu0 0.0
        %538 = vmatpush.msra.mxu0 0.0
        %539 = vmatpush.msra.mxu0 0.0
        %540 = vmatpush.msra.mxu0 0.0
        %541 = vmatpush.msra.mxu0 0.0
        %542 = vmatpush.msra.mxu0 %v306
        %543 = vmatpush.msra.mxu0 %v304
        %544 = vmatpush.msra.mxu0 %v302
        %545 = vmatpush.msra.mxu0 %v300
        %546 = vmatmul.f32.gmra.mxu0 %v490
        %v547 = vpop.f32.mrf.mxu0
        %v548 = vadd.f32 %v471, %v547
        %549 = vmatmul.f32.gmra.mxu0 %v493
        %v550 = vpop.f32.mrf.mxu0
        %v551 = vadd.f32 %v476, %v550
        %552 = vmatmul.f32.gmra.mxu0 %v496
        %v553 = vpop.f32.mrf.mxu0
        %v554 = vadd.f32 %v481, %v553
        %555 = vmatmul.f32.gmra.mxu0 %v499
        %v556 = vpop.f32.mrf.mxu0
        %v557 = vadd.f32 %v486, %v556
        %558 = vdwg.mxu0
        %v559 = vsub.f32 0.0, %v519
        %v560 = vsub.f32 0.0, %v548
        %v561 = vsub.f32 0.0, %v522
        %v562 = vsub.f32 0.0, %v551
        %v563 = vsub.f32 0.0, %v525
        %v564 = vsub.f32 0.0, %v554
        %v565 = vsub.f32 0.0, %v528
        %v566 = vsub.f32 0.0, %v557
        %v567 = vmul.f32 %v559, 1.442695
        %v568 = vpow.pop %v567
        %v569 = vmul.f32 %v560, 1.442695
        %v570 = vpow.pop %v569
        %v571 = vmul.f32 %v561, 1.442695
        %v572 = vpow.pop %v571
        %v573 = vmul.f32 %v562, 1.442695
        %v574 = vpow.pop %v573
        %v575 = vmul.f32 %v563, 1.442695
        %v576 = vpow.pop %v575
        %v577 = vmul.f32 %v564, 1.442695
        %v578 = vpow.pop %v577
        %v579 = vmul.f32 %v565, 1.442695
        %v580 = vpow.pop %v579
        %v581 = vmul.f32 %v566, 1.442695
        %v582 = vpow.pop %v581
        %v583 = vadd.f32 %v568, 1.0
        %v584 = vadd.f32 %v570, 1.0
        %v585 = vadd.f32 %v572, 1.0
        %v586 = vadd.f32 %v574, 1.0
        %v587 = vadd.f32 %v576, 1.0
        %v588 = vadd.f32 %v578, 1.0
        %v589 = vadd.f32 %v580, 1.0
        %v590 = vadd.f32 %v582, 1.0
        %v591 = vrcp.pop %v583
        %v592 = vmul.f32 %v583, %v591
        %v593 = vsub.f32 1.0, %v592
        %v594 = vmul.f32 %v591, %v593
        %v595 = vadd.f32 %v591, %v594
        %vm596 = vweird.f32 %v583
        %vm597 = vweird.f32 %v591
        %vm598 = vmor %vm596, %vm597
        %v599 = vsel %vm598, %v591, %v595
        %v600 = vand.u32 2147483647, %v583
        %vm601 = vcmp.eq.f32.partialorder %v600, 8.507059e+37
        %v602 = vand.u32 %v583, 2147483648
        %v603 = vor.u32 1.1754944e-38, %v602
        %v604 = vsel %vm601, %v603, %v599
        %v605 = vmul.f32 1.0, %v604
        %v606 = vrcp.pop %v584
        %v607 = vmul.f32 %v584, %v606
        %v608 = vsub.f32 1.0, %v607
        %v609 = vmul.f32 %v606, %v608
        %v610 = vadd.f32 %v606, %v609
        %vm611 = vweird.f32 %v584
        %vm612 = vweird.f32 %v606
        %vm613 = vmor %vm611, %vm612
        %v614 = vsel %vm613, %v606, %v610
        %v615 = vand.u32 2147483647, %v584
        %vm616 = vcmp.eq.f32.partialorder %v615, 8.507059e+37
        %v617 = vand.u32 %v584, 2147483648
        %v618 = vor.u32 1.1754944e-38, %v617
        %v619 = vsel %vm616, %v618, %v614
        %v620 = vmul.f32 1.0, %v619
        %v621 = vrcp.pop %v585
        %v622 = vmul.f32 %v585, %v621
        %v623 = vsub.f32 1.0, %v622
        %v624 = vmul.f32 %v621, %v623
        %v625 = vadd.f32 %v621, %v624
        %vm626 = vweird.f32 %v585
        %vm627 = vweird.f32 %v621
        %vm628 = vmor %vm626, %vm627
        %v629 = vsel %vm628, %v621, %v625
        %v630 = vand.u32 2147483647, %v585
        %vm631 = vcmp.eq.f32.partialorder %v630, 8.507059e+37
        %v632 = vand.u32 %v585, 2147483648
        %v633 = vor.u32 1.1754944e-38, %v632
        %v634 = vsel %vm631, %v633, %v629
        %v635 = vmul.f32 1.0, %v634
        %v636 = vrcp.pop %v586
        %v637 = vmul.f32 %v586, %v636
        %v638 = vsub.f32 1.0, %v637
        %v639 = vmul.f32 %v636, %v638
        %v640 = vadd.f32 %v636, %v639
        %vm641 = vweird.f32 %v586
        %vm642 = vweird.f32 %v636
        %vm643 = vmor %vm641, %vm642
        %v644 = vsel %vm643, %v636, %v640
        %v645 = vand.u32 2147483647, %v586
        %vm646 = vcmp.eq.f32.partialorder %v645, 8.507059e+37
        %v647 = vand.u32 %v586, 2147483648
        %v648 = vor.u32 1.1754944e-38, %v647
        %v649 = vsel %vm646, %v648, %v644
        %v650 = vmul.f32 1.0, %v649
        %v651 = vrcp.pop %v587
        %v652 = vmul.f32 %v587, %v651
        %v653 = vsub.f32 1.0, %v652
        %v654 = vmul.f32 %v651, %v653
        %v655 = vadd.f32 %v651, %v654
        %vm656 = vweird.f32 %v587
        %vm657 = vweird.f32 %v651
        %vm658 = vmor %vm656, %vm657
        %v659 = vsel %vm658, %v651, %v655
        %v660 = vand.u32 2147483647, %v587
        %vm661 = vcmp.eq.f32.partialorder %v660, 8.507059e+37
        %v662 = vand.u32 %v587, 2147483648
        %v663 = vor.u32 1.1754944e-38, %v662
        %v664 = vsel %vm661, %v663, %v659
        %v665 = vmul.f32 1.0, %v664
        %v666 = vrcp.pop %v588
        %v667 = vmul.f32 %v588, %v666
        %v668 = vsub.f32 1.0, %v667
        %v669 = vmul.f32 %v666, %v668
        %v670 = vadd.f32 %v666, %v669
        %vm671 = vweird.f32 %v588
        %vm672 = vweird.f32 %v666
        %vm673 = vmor %vm671, %vm672
        %v674 = vsel %vm673, %v666, %v670
        %v675 = vand.u32 2147483647, %v588
        %vm676 = vcmp.eq.f32.partialorder %v675, 8.507059e+37
        %v677 = vand.u32 %v588, 2147483648
        %v678 = vor.u32 1.1754944e-38, %v677
        %v679 = vsel %vm676, %v678, %v674
        %v680 = vmul.f32 1.0, %v679
        %v681 = vrcp.pop %v589
        %v682 = vmul.f32 %v589, %v681
        %v683 = vsub.f32 1.0, %v682
        %v684 = vmul.f32 %v681, %v683
        %v685 = vadd.f32 %v681, %v684
        %vm686 = vweird.f32 %v589
        %vm687 = vweird.f32 %v681
        %vm688 = vmor %vm686, %vm687
        %v689 = vsel %vm688, %v681, %v685
        %v690 = vand.u32 2147483647, %v589
        %vm691 = vcmp.eq.f32.partialorder %v690, 8.507059e+37
        %v692 = vand.u32 %v589, 2147483648
        %v693 = vor.u32 1.1754944e-38, %v692
        %v694 = vsel %vm691, %v693, %v689
        %v695 = vmul.f32 1.0, %v694
        %v696 = vrcp.pop %v590
        %v697 = vmul.f32 %v590, %v696
        %v698 = vsub.f32 1.0, %v697
        %v699 = vmul.f32 %v696, %v698
        %v700 = vadd.f32 %v696, %v699
        %vm701 = vweird.f32 %v590
        %vm702 = vweird.f32 %v696
        %vm703 = vmor %vm701, %vm702
        %v704 = vsel %vm703, %v696, %v700
        %v705 = vand.u32 2147483647, %v590
        %vm706 = vcmp.eq.f32.partialorder %v705, 8.507059e+37
        %v707 = vand.u32 %v590, 2147483648
        %v708 = vor.u32 1.1754944e-38, %v707
        %v709 = vsel %vm706, %v708, %v704
        %v710 = vmul.f32 1.0, %v709
        %712 = vset.pattern.permute.xlu0 0
        %713 = vperm.xlu0 %712, %v414
        %v714 = vpop.permute.xlu0 %713
        %717 = vset.pattern.permute.xlu0 0
        %718 = vperm.xlu0 %717, %v429
        %v719 = vpop.permute.xlu0 %718
        %722 = vset.pattern.permute.xlu0 0
        %723 = vperm.xlu0 %722, %v444
        %v724 = vpop.permute.xlu0 %723
        %727 = vset.pattern.permute.xlu0 0
        %728 = vperm.xlu0 %727, %v459
        %v729 = vpop.permute.xlu0 %728
        %v731 = vadd.f32 %v714, %v605
        %v732 = vadd.f32 %v714, %v620
        %v733 = vadd.f32 %v719, %v635
        %v734 = vadd.f32 %v719, %v650
        %v735 = vadd.f32 %v724, %v665
        %v736 = vadd.f32 %v724, %v680
        %v737 = vadd.f32 %v729, %v695
        %v738 = vadd.f32 %v729, %v710
        %v739 = vmul.f32 %v299, %v731
        %v740 = vmul.f32 %v300, %v732
        %v741 = vmul.f32 %v301, %v733
        %v742 = vmul.f32 %v302, %v734
        %v743 = vmul.f32 %v303, %v735
        %v744 = vmul.f32 %v304, %v736
        %v745 = vmul.f32 %v305, %v737
        %v746 = vmul.f32 %v306, %v738
        %747 = vst [vmem:[%s298] sm:$0xff] %v739
        %748 = vst [vmem:[%s298 + $0x8] sm:$0xff] %v740
        %749 = vst [vmem:[%s298 + $0x10] sm:$0xff] %v741
        %750 = vst [vmem:[%s298 + $0x18] sm:$0xff] %v742
        %751 = vst [vmem:[%s298 + $0x20] sm:$0xff] %v743
        %752 = vst [vmem:[%s298 + $0x28] sm:$0xff] %v744
        %753 = vst [vmem:[%s298 + $0x30] sm:$0xff] %v745
        %754 = vst [vmem:[%s298 + $0x38] sm:$0xff] %v746
        %s755 = sand.u32 %s184, 1
        %s756 = scalar_lea.sflag [#allocation4], %s755
        %s757 = sand.u32 %s184, 1
        %s758 = smul.addr %s757, 64
        %s759 = scalar_lea.vmem [#allocation5], %s758
        // Predicated region
        $region53: #{tpu_custom_call.1} parent=47 // pred_check
          %p760 = pneg %p194
        $region54: #{tpu_custom_call.1} parent=47 // pred_check_branch
          %762 = sbr.rel (%p760) target = $region56
        $region55: #{tpu_custom_call.1} parent=47 // pred_region
          %764 = vsyncadd %s756, 0
          %s765 = smul.addr %s24, 8
          %s766 = smul.addr %s765, 8
          %s767 = scalar_lea.hbm %s7, %s766
          %s768 = sshll.u32 %s759, 4
          %s769 = int_to_ptr.vmem [resolvable:$true] %s768
          %s770 = sshll.u32 %s767, 4
          %s771 = int_to_ptr.hbm [resolvable:$true] %s770
          %776 = dma.vmem_to_hbm [thread:$0]  %s769, 1024, %s771, %s756, 256, 256, 16
        $region56: #{tpu_custom_call.1} parent=47 // pred_fallthru
          _
      $region48: #{tpu_custom_call.1} parent=5 // pred_fallthru
        _
      %p777 = scmp.le.s32.totalorder 2, %s19
      // Predicated region
      $region57: #{tpu_custom_call.1} parent=5 // pred_check
        %p778 = pneg %p777
      $region58: #{tpu_custom_call.1} parent=5 // pred_check_branch
        %780 = sbr.rel (%p778) target = $region60
      $region59: #{tpu_custom_call.1} parent=5 // pred_region
        %s781 = ssub.s32 %s19, 2
        // Predicated region
        $region61: #{tpu_custom_call.1} parent=59 // pred_check
          %p782 = pneg %p200
        $region62: #{tpu_custom_call.1} parent=59 // pred_check_branch
          %784 = sbr.rel (%p782) target = $region64
        $region63: #{tpu_custom_call.1} parent=59 // pred_region
          %s785 = sand.u32 %s185, 1
          %s786 = scalar_lea.sflag [#allocation4], %s785
          %s787 = sand.u32 %s185, 1
          %s788 = smul.addr %s787, 64
          %s789 = scalar_lea.vmem [#allocation5], %s788
          %791 = dma.done %s786, 1024
        $region64: #{tpu_custom_call.1} parent=59 // pred_fallthru
          _
      $region60: #{tpu_custom_call.1} parent=5 // pred_fallthru
        _
    $region6: #{tpu_custom_call.1} parent=1 // loop_footer
      %s23 = sadd.s32 1, %s19
    $region7: #{tpu_custom_call.1} parent=1 // loop_footer_branch
      %18 = sbr.rel target = $region3
    $region8: #{tpu_custom_call.1} parent=1 // loop_exit
      _
    %792 = vsyncpa [#allocation3], 1
    %s793 = scalar_lea.sflag [#allocation3], 1
    %794 = vsyncpa %s793, 1
    %795 = vsyncpa [#allocation4], 1
    %s796 = scalar_lea.sflag [#allocation4], 1
    %797 = vsyncpa %s796, 1

</llo_original>
